<compile_context>
chip_gen: v7x
topology: tpu7x:2x2x1
jax: 0.10.0
libtpu: 0.0.40
codegen_flags: <defaults>
</compile_context>

<pallas_src>
import functools

import jax
import jax.numpy as jnp
from jax.experimental import pallas as pl
from jax.experimental.pallas import tpu as pltpu


def ac_policy_kernel(x_ref, w1t_ref, b1_ref, w23t_ref, b23_ref, out_ref, *, out_dim):
    # x_ref: (in_dim, TB) -- batch in lanes.
    xT = x_ref[...]

    # h^T = relu(W1^T @ x^T + b1)                      -> (hidden, TB)
    hT = jnp.dot(w1t_ref[...], xT, preferred_element_type=jnp.float32) + b1_ref[...]
    hT = jnp.maximum(hT, 0.0)

    # Fused heads: z^T = W23^T @ h^T + b23             -> (HEAD_ROWS, TB)
    #   rows 0..out_dim-1 : action logits
    #   row  out_dim      : state value
    #   remaining rows    : zero padding
    zT = jnp.dot(w23t_ref[...], hT, preferred_element_type=jnp.float32) + b23_ref[...]

    row = jax.lax.broadcasted_iota(jnp.int32, (zT.shape[0], 1), 0)   # (HEAD_ROWS, 1)
    is_logit = row < out_dim                                         # broadcasts over lanes

    # Numerically stable softmax over the logit rows (per batch lane).
    # Requires out_dim >= 1 (otherwise m = -inf -> NaN).
    masked = jnp.where(is_logit, zT, -jnp.inf)
    m = jnp.max(masked, axis=0, keepdims=True)        # (1, TB)
    e = jnp.exp(masked - m)                           # pad rows -> exp(-inf) = 0
    denom = jnp.sum(e, axis=0, keepdims=True)         # (1, TB)
    probs = e / denom                                 # exact divide: rows sum to 1

    # Lane-dense slab: prob rows | value row | zero rows  -> unmasked vst.
    out_ref[...] = jnp.where(is_logit, probs,
                             jnp.where(row == out_dim, zT, 0.0))


def ac_policy_forward(x, params, *, block_b=4096):
    """x: (B, input_dim) f32.  params: dict of w1,b1,w2,b2,w3,b3 (x@W+b layout).

    Returns (action_prob (B, out_dim), state_values (B, 1)).
    """
    B, in_dim = x.shape
    hidden = params["w1"].shape[1]
    out_dim = params["w2"].shape[1]
    head_rows = max(8, ((out_dim + 1 + 7) // 8) * 8)   # sublane-padded fused-head size

    # ---- transposed / fused weights (tiny, built once) ----
    w1t = params["w1"].T.astype(jnp.float32)                     # (hidden, in_dim)
    b1c = params["b1"].reshape(hidden, 1).astype(jnp.float32)    # (hidden, 1)
    w23t = jnp.zeros((head_rows, hidden), jnp.float32)
    w23t = w23t.at[:out_dim, :].set(params["w2"].T)
    w23t = w23t.at[out_dim, :].set(params["w3"].reshape(hidden))
    b23c = jnp.zeros((head_rows, 1), jnp.float32)
    b23c = b23c.at[:out_dim, 0].set(params["b2"].reshape(-1))
    b23c = b23c.at[out_dim, 0].set(params["b3"].reshape(-1)[0])

    # ---- batch tiling along the lane axis: balanced, 128-aligned tiles ----
    n_tiles = pl.cdiv(B, block_b)
    tb = ((pl.cdiv(B, n_tiles) + 127) // 128) * 128
    Bp = n_tiles * tb

    # TODO(synk): producers that can emit x batch-in-lanes ((in_dim, B)) should
    # pass it directly; this transpose+pad only moves ~in_dim*4 bytes per row.
    x_t = jnp.transpose(x).astype(jnp.float32)                   # (in_dim, B)
    if Bp != B:
        x_t = jnp.pad(x_t, ((0, 0), (0, Bp - B)))

    cost = pl.CostEstimate(
        flops=2 * Bp * hidden * (in_dim + head_rows),
        transcendentals=Bp * head_rows,                          # exp over the full slab
        bytes_accessed=4 * (in_dim * Bp + hidden * in_dim + hidden
                            + head_rows * hidden + head_rows + head_rows * Bp),
    )

    out = pl.pallas_call(
        functools.partial(ac_policy_kernel, out_dim=out_dim),
        out_shape=jax.ShapeDtypeStruct((head_rows, Bp), jnp.float32),
        grid=(n_tiles,),
        in_specs=[
            pl.BlockSpec((in_dim, tb), lambda i: (0, i)),         # x^T: tiled over batch lanes
            pl.BlockSpec((hidden, in_dim), lambda i: (0, 0)),     # W1^T: resident
            pl.BlockSpec((hidden, 1), lambda i: (0, 0)),          # b1:   resident
            pl.BlockSpec((head_rows, hidden), lambda i: (0, 0)),  # fused head W^T: resident
            pl.BlockSpec((head_rows, 1), lambda i: (0, 0)),       # fused head b:   resident
        ],
        out_specs=pl.BlockSpec((head_rows, tb), lambda i: (0, i)),
        compiler_params=pltpu.CompilerParams(
            # "parallel" lets the batch axis shard across TensorCores where available.
            # TODO(synk): on v7x, switch to pltpu.CORE_PARALLEL / pl.core_map for an
            # explicit 2-TC split once the target generation is known.
            dimension_semantics=("parallel",),
            vmem_limit_bytes=32 * 1024 * 1024,
        ),
        cost_estimate=cost,
    )(x_t, w1t, b1c, w23t, b23c)

    action_prob = out[:out_dim, :B].T                # (B, out_dim)
    state_values = out[out_dim:out_dim + 1, :B].T    # (B, 1)
    return action_prob, state_values


def init_params(key, input_dim=4, hidden_dim=128, output_dim=2):
    """Deterministic init matching nn.Linear's U(-1/sqrt(fan_in), +1/sqrt(fan_in))."""
    ks = jax.random.split(key, 6)

    def linear(kw, kb, fan_in, fan_out):
        bound = 1.0 / jnp.sqrt(float(fan_in))
        w = jax.random.uniform(kw, (fan_in, fan_out), jnp.float32, -bound, bound)
        b = jax.random.uniform(kb, (1, fan_out), jnp.float32, -bound, bound)
        return w, b

    w1, b1 = linear(ks[0], ks[1], input_dim, hidden_dim)
    w2, b2 = linear(ks[2], ks[3], hidden_dim, output_dim)
    w3, b3 = linear(ks[4], ks[5], hidden_dim, 1)
    return {"w1": w1, "b1": b1, "w2": w2, "b2": b2, "w3": w3, "b3": b3}


if __name__ == "__main__":
    key = jax.random.PRNGKey(0)
    k_param, k_x = jax.random.split(key)

    input_dim, hidden_dim, output_dim = 4, 128, 2
    params = init_params(k_param, input_dim, hidden_dim, output_dim)

    # Check an aligned and a ragged batch (exercises the lane-padding path).
    for batch in (8, 37):
        kx = jax.random.fold_in(k_x, batch)
        x = jax.random.normal(kx, (batch, input_dim), jnp.float32)

        action_prob, state_values = ac_policy_forward(x, params)
        jax.block_until_ready((action_prob, state_values))

        # pure-JAX reference
        h_ref = jnp.maximum(x @ params["w1"] + params["b1"], 0.0)
        prob_ref = jax.nn.softmax(h_ref @ params["w2"] + params["b2"], axis=-1)
        val_ref = h_ref @ params["w3"] + params["b3"]

        assert action_prob.shape == (batch, output_dim)
        assert state_values.shape == (batch, 1)
        # Exact divide in the kernel -> rows sum to 1 to f32 rounding.
        assert jnp.allclose(jnp.sum(action_prob, axis=-1), 1.0, atol=1e-5)
        # 5e-3 covers default-precision (bf16-pass) MXU rounding on real hardware;
        # interpret mode is exact f32 and matches to ~1e-6.
        assert jnp.allclose(action_prob, prob_ref, atol=5e-3)
        assert jnp.allclose(state_values, val_ref, atol=5e-3)

    print("KERNEL_OK")
</pallas_src>

<mosaic_0001>
module attributes {stable_mosaic.version = 11 : i64} {
  func.func @ac_policy_kernel(%arg0: i32, %arg1: memref<4x128xf32, #tpu.memory_space<vmem>>, %arg2: memref<128x4xf32, #tpu.memory_space<vmem>>, %arg3: memref<128x1xf32, #tpu.memory_space<vmem>>, %arg4: memref<8x128xf32, #tpu.memory_space<vmem>>, %arg5: memref<8x1xf32, #tpu.memory_space<vmem>>, %arg6: memref<8x128xf32, #tpu.memory_space<vmem>>) attributes {dimension_semantics = [#tpu.dimension_semantics<parallel>], iteration_bounds = array<i64: 1>, scalar_prefetch = 0 : i64, scratch_operands = 0 : i64, tpu.core_type = #tpu.core_type<tc>, window_params = [{transform_indices = @transform_0, window_bounds = array<i64: 4, 128>}, {pipeline_mode = #tpu.pipeline_mode<synchronous>, transform_indices = @transform_1, window_bounds = array<i64: 128, 4>}, {pipeline_mode = #tpu.pipeline_mode<synchronous>, transform_indices = @transform_2, window_bounds = array<i64: 128, 1>}, {pipeline_mode = #tpu.pipeline_mode<synchronous>, transform_indices = @transform_3, window_bounds = array<i64: 8, 128>}, {pipeline_mode = #tpu.pipeline_mode<synchronous>, transform_indices = @transform_4, window_bounds = array<i64: 8, 1>}, {transform_indices = @transform_5, window_bounds = array<i64: 8, 128>}]} {
    %c0 = arith.constant 0 : index
    %c0_0 = arith.constant 0 : index
    %0 = vector.load %arg1[%c0, %c0_0] : memref<4x128xf32, #tpu.memory_space<vmem>>, vector<4x128xf32>
    %c0_1 = arith.constant 0 : index
    %c0_2 = arith.constant 0 : index
    %1 = vector.load %arg2[%c0_1, %c0_2] : memref<128x4xf32, #tpu.memory_space<vmem>>, vector<128x4xf32>
    %cst = arith.constant dense<0.000000e+00> : vector<128x128xf32>
    %2 = tpu.matmul %1, %0, %cst {dimension_numbers = #tpu.dot_dimension_numbers<[1], [0], [0], [1], [0, 0, 1, 1], [], []>} : vector<128x4xf32>, vector<4x128xf32>, vector<128x128xf32> -> vector<128x128xf32>
    %c0_3 = arith.constant 0 : index
    %c0_4 = arith.constant 0 : index
    %3 = vector.load %arg3[%c0_3, %c0_4] : memref<128x1xf32, #tpu.memory_space<vmem>>, vector<128x1xf32>
    %4 = vector.broadcast %3 : vector<128x1xf32> to vector<128x128xf32>
    %5 = arith.addf %2, %4 : vector<128x128xf32>
    %cst_5 = arith.constant 0.000000e+00 : f32
    %6 = vector.broadcast %cst_5 : f32 to vector<128x128xf32>
    %7 = arith.maximumf %5, %6 : vector<128x128xf32>
    %c0_6 = arith.constant 0 : index
    %c0_7 = arith.constant 0 : index
    %8 = vector.load %arg4[%c0_6, %c0_7] : memref<8x128xf32, #tpu.memory_space<vmem>>, vector<8x128xf32>
    %cst_8 = arith.constant dense<0.000000e+00> : vector<8x128xf32>
    %9 = tpu.matmul %8, %7, %cst_8 {dimension_numbers = #tpu.dot_dimension_numbers<[1], [0], [0], [1], [0, 0, 1, 1], [], []>} : vector<8x128xf32>, vector<128x128xf32>, vector<8x128xf32> -> vector<8x128xf32>
    %c0_9 = arith.constant 0 : index
    %c0_10 = arith.constant 0 : index
    %10 = vector.load %arg5[%c0_9, %c0_10] : memref<8x1xf32, #tpu.memory_space<vmem>>, vector<8x1xf32>
    %11 = vector.broadcast %10 : vector<8x1xf32> to vector<8x128xf32>
    %12 = arith.addf %9, %11 : vector<8x128xf32>
    %13 = tpu.iota {dimensions = array<i32: 0>} : vector<8x1xi32>
    %c2_i32 = arith.constant 2 : i32
    %14 = vector.broadcast %c2_i32 : i32 to vector<8x1xi32>
    %15 = arith.cmpi slt, %13, %14 : vector<8x1xi32>
    %cst_11 = arith.constant 0xFF800000 : f32
    %16 = vector.shape_cast %15 : vector<8x1xi1> to vector<8x1xi1>
    %17 = vector.broadcast %16 : vector<8x1xi1> to vector<8x128xi1>
    %18 = vector.broadcast %cst_11 : f32 to vector<8x128xf32>
    %19 = arith.select %17, %12, %18 : vector<8x128xi1>, vector<8x128xf32>
    %cst_12 = arith.constant dense<0xFF800000> : vector<128xf32>
    %20 = vector.multi_reduction <maximumf>, %19, %cst_12 [0] : vector<8x128xf32> to vector<128xf32>
    %21 = vector.shape_cast %20 : vector<128xf32> to vector<1x128xf32>
    %22 = vector.broadcast %21 : vector<1x128xf32> to vector<8x128xf32>
    %23 = arith.subf %19, %22 : vector<8x128xf32>
    %24 = math.exp %23 : vector<8x128xf32>
    %cst_13 = arith.constant dense<0.000000e+00> : vector<128xf32>
    %25 = vector.multi_reduction <add>, %24, %cst_13 [0] : vector<8x128xf32> to vector<128xf32>
    %26 = vector.shape_cast %25 : vector<128xf32> to vector<1x128xf32>
    %27 = vector.broadcast %26 : vector<1x128xf32> to vector<8x128xf32>
    %28 = arith.divf %24, %27 : vector<8x128xf32>
    %c2_i32_14 = arith.constant 2 : i32
    %29 = vector.broadcast %c2_i32_14 : i32 to vector<8x1xi32>
    %30 = arith.cmpi eq, %13, %29 : vector<8x1xi32>
    %cst_15 = arith.constant 0.000000e+00 : f32
    %31 = vector.shape_cast %30 : vector<8x1xi1> to vector<8x1xi1>
    %32 = vector.broadcast %31 : vector<8x1xi1> to vector<8x128xi1>
    %33 = vector.broadcast %cst_15 : f32 to vector<8x128xf32>
    %34 = arith.select %32, %12, %33 : vector<8x128xi1>, vector<8x128xf32>
    %35 = vector.shape_cast %15 : vector<8x1xi1> to vector<8x1xi1>
    %36 = vector.broadcast %35 : vector<8x1xi1> to vector<8x128xi1>
    %37 = arith.select %36, %28, %34 : vector<8x128xi1>, vector<8x128xf32>
    %c0_16 = arith.constant 0 : index
    %c0_17 = arith.constant 0 : index
    %38 = vector.load %arg6[%c0_16, %c0_17] : memref<8x128xf32, #tpu.memory_space<vmem>>, vector<8x128xf32>
    tpu.vector_store %arg6[%c0_16, %c0_17], %37 {strides = array<i32>} : memref<8x128xf32, #tpu.memory_space<vmem>>, vector<8x128xf32>,
    return
  }
  func.func @transform_0(%arg0: i32) -> (i32, i32) {
    %c0_i32 = arith.constant 0 : i32
    %c0_i32_0 = arith.constant 0 : i32
    return %c0_i32, %arg0 : i32, i32
  }
  func.func @transform_1(%arg0: i32) -> (i32, i32) {
    %c0_i32 = arith.constant 0 : i32
    %c0_i32_0 = arith.constant 0 : i32
    %c0_i32_1 = arith.constant 0 : i32
    return %c0_i32, %c0_i32_0 : i32, i32
  }
  func.func @transform_2(%arg0: i32) -> (i32, i32) {
    %c0_i32 = arith.constant 0 : i32
    %c0_i32_0 = arith.constant 0 : i32
    %c0_i32_1 = arith.constant 0 : i32
    return %c0_i32, %c0_i32_0 : i32, i32
  }
  func.func @transform_3(%arg0: i32) -> (i32, i32) {
    %c0_i32 = arith.constant 0 : i32
    %c0_i32_0 = arith.constant 0 : i32
    %c0_i32_1 = arith.constant 0 : i32
    return %c0_i32, %c0_i32_0 : i32, i32
  }
  func.func @transform_4(%arg0: i32) -> (i32, i32) {
    %c0_i32 = arith.constant 0 : i32
    %c0_i32_0 = arith.constant 0 : i32
    %c0_i32_1 = arith.constant 0 : i32
    return %c0_i32, %c0_i32_0 : i32, i32
  }
  func.func @transform_5(%arg0: i32) -> (i32, i32) {
    %c0_i32 = arith.constant 0 : i32
    %c0_i32_0 = arith.constant 0 : i32
    return %c0_i32, %arg0 : i32, i32
  }
}

</mosaic_0001>

<llo_original>
// kernel: tpu_custom_call.1
$region0: #{tpu_custom_call.1}
  #allocation0 [shape = 'u32[]', space=smem, size = 0x4, offset = 0x4, fixed_abs, tag = 'smem constant byte address 0x4 - core index']
  #allocation1 [shape = 'u32[144,128]{1,0:T(1,128)}', space=vmem, size = 0x12000, scoped, tag = 'internal scratch']
  %s0 = inlined_call_operand.vmem [shape: f32[4,128], index: 0, kind: input, shape index: {}]
  %s1 = inlined_call_operand.vmem [shape: f32[128,4], index: 1, kind: input, shape index: {}]
  %s2 = inlined_call_operand.vmem [shape: f32[128,1], index: 2, kind: input, shape index: {}]
  %s3 = inlined_call_operand.vmem [shape: f32[8,128], index: 3, kind: input, shape index: {}]
  %s4 = inlined_call_operand.vmem [shape: f32[8,1], index: 4, kind: input, shape index: {}]
  %s5 = inlined_call_operand.hbm [shape: f32[8,128], index: 5, kind: output, shape index: {}]
  %s6 = sld [smem:[#allocation0]]
  $region30: #{tpu_custom_call.1} parent=0
    _
  %s8 = ssub.s32 1, %s6
  %s9 = scalar_select 0, %s8, %s6
  $region1: #{tpu_custom_call.1} parent=0
    #allocation2 [shape = 'u8[4096]{0}', space=vmem, size = 0x1000, scoped, tag = 'output window, operand 0, single buffered']
    #allocation3 [shape = 's32[1]{0}', space=sflag, size = 0x4, scoped, tag = 'scoped memory for tpu_custom_call.1']
    %10 = vsyncpa [#allocation3], 0
    // Predicated region
    $region2: #{tpu_custom_call.1} parent=1 // pred_check
      _
    $region3: #{tpu_custom_call.1} parent=1 // pred_check_branch
      %12 = sbr.rel (0) target = $region5
    $region4: #{tpu_custom_call.1} parent=1 // pred_region
      _
    $region5: #{tpu_custom_call.1} parent=1 // pred_fallthru
      _
    // Predicated region
    $region6: #{tpu_custom_call.1} parent=1 // pred_check
      _
    $region7: #{tpu_custom_call.1} parent=1 // pred_check_branch
      %14 = sbr.rel (0) target = $region9
    $region8: #{tpu_custom_call.1} parent=1 // pred_region
      _
    $region9: #{tpu_custom_call.1} parent=1 // pred_fallthru
      _
    // Predicated region
    $region10: #{tpu_custom_call.1} parent=1 // pred_check
      _
    $region11: #{tpu_custom_call.1} parent=1 // pred_check_branch
      %16 = sbr.rel (0) target = $region13
    $region12: #{tpu_custom_call.1} parent=1 // pred_region
      _
    $region13: #{tpu_custom_call.1} parent=1 // pred_fallthru
      _
    // Predicated region
    $region14: #{tpu_custom_call.1} parent=1 // pred_check
      _
    $region15: #{tpu_custom_call.1} parent=1 // pred_check_branch
      %18 = sbr.rel (0) target = $region17
    $region16: #{tpu_custom_call.1} parent=1 // pred_region
      _
    $region17: #{tpu_custom_call.1} parent=1 // pred_fallthru
      _
    // Predicated region
    $region18: #{tpu_custom_call.1} parent=1 // pred_check
      _
    $region19: #{tpu_custom_call.1} parent=1 // pred_check_branch
      %20 = sbr.rel (0) target = $region21
    $region20: #{tpu_custom_call.1} parent=1 // pred_region
      _
    $region21: #{tpu_custom_call.1} parent=1 // pred_fallthru
      _
    %v21 = vld [vmem:[%s0] sm:$0xf]
    %v22 = vld [vmem:[%s1] sm:$0xff]
    %v23 = vld [vmem:[%s1 + $0x8] sm:$0xff]
    %v24 = vld [vmem:[%s1 + $0x10] sm:$0xff]
    %v25 = vld [vmem:[%s1 + $0x18] sm:$0xff]
    %v26 = vld [vmem:[%s1 + $0x20] sm:$0xff]
    %v27 = vld [vmem:[%s1 + $0x28] sm:$0xff]
    %v28 = vld [vmem:[%s1 + $0x30] sm:$0xff]
    %v29 = vld [vmem:[%s1 + $0x38] sm:$0xff]
    %v30 = vld [vmem:[%s1 + $0x40] sm:$0xff]
    %v31 = vld [vmem:[%s1 + $0x48] sm:$0xff]
    %v32 = vld [vmem:[%s1 + $0x50] sm:$0xff]
    %v33 = vld [vmem:[%s1 + $0x58] sm:$0xff]
    %v34 = vld [vmem:[%s1 + $0x60] sm:$0xff]
    %v35 = vld [vmem:[%s1 + $0x68] sm:$0xff]
    %v36 = vld [vmem:[%s1 + $0x70] sm:$0xff]
    %v37 = vld [vmem:[%s1 + $0x78] sm:$0xff]
    %v38 = vld [vmem:[%s2] sm:$0xff]
    %v39 = vld [vmem:[%s2 + $0x8] sm:$0xff]
    %v40 = vld [vmem:[%s2 + $0x10] sm:$0xff]
    %v41 = vld [vmem:[%s2 + $0x18] sm:$0xff]
    %v42 = vld [vmem:[%s2 + $0x20] sm:$0xff]
    %v43 = vld [vmem:[%s2 + $0x28] sm:$0xff]
    %v44 = vld [vmem:[%s2 + $0x30] sm:$0xff]
    %v45 = vld [vmem:[%s2 + $0x38] sm:$0xff]
    %v46 = vld [vmem:[%s2 + $0x40] sm:$0xff]
    %v47 = vld [vmem:[%s2 + $0x48] sm:$0xff]
    %v48 = vld [vmem:[%s2 + $0x50] sm:$0xff]
    %v49 = vld [vmem:[%s2 + $0x58] sm:$0xff]
    %v50 = vld [vmem:[%s2 + $0x60] sm:$0xff]
    %v51 = vld [vmem:[%s2 + $0x68] sm:$0xff]
    %v52 = vld [vmem:[%s2 + $0x70] sm:$0xff]
    %v53 = vld [vmem:[%s2 + $0x78] sm:$0xff]
    %55 = vset.pattern.permute.xlu0 0
    %56 = vperm.xlu0 %55, %v38
    %v57 = vpop.permute.xlu0 %56
    %60 = vset.pattern.permute.xlu0 0
    %61 = vperm.xlu0 %60, %v39
    %v62 = vpop.permute.xlu0 %61
    %65 = vset.pattern.permute.xlu0 0
    %66 = vperm.xlu0 %65, %v40
    %v67 = vpop.permute.xlu0 %66
    %70 = vset.pattern.permute.xlu0 0
    %71 = vperm.xlu0 %70, %v41
    %v72 = vpop.permute.xlu0 %71
    %75 = vset.pattern.permute.xlu0 0
    %76 = vperm.xlu0 %75, %v42
    %v77 = vpop.permute.xlu0 %76
    %80 = vset.pattern.permute.xlu0 0
    %81 = vperm.xlu0 %80, %v43
    %v82 = vpop.permute.xlu0 %81
    %85 = vset.pattern.permute.xlu0 0
    %86 = vperm.xlu0 %85, %v44
    %v87 = vpop.permute.xlu0 %86
    %90 = vset.pattern.permute.xlu0 0
    %91 = vperm.xlu0 %90, %v45
    %v92 = vpop.permute.xlu0 %91
    %95 = vset.pattern.permute.xlu0 0
    %96 = vperm.xlu0 %95, %v46
    %v97 = vpop.permute.xlu0 %96
    %100 = vset.pattern.permute.xlu0 0
    %101 = vperm.xlu0 %100, %v47
    %v102 = vpop.permute.xlu0 %101
    %105 = vset.pattern.permute.xlu0 0
    %106 = vperm.xlu0 %105, %v48
    %v107 = vpop.permute.xlu0 %106
    %110 = vset.pattern.permute.xlu0 0
    %111 = vperm.xlu0 %110, %v49
    %v112 = vpop.permute.xlu0 %111
    %115 = vset.pattern.permute.xlu0 0
    %116 = vperm.xlu0 %115, %v50
    %v117 = vpop.permute.xlu0 %116
    %120 = vset.pattern.permute.xlu0 0
    %121 = vperm.xlu0 %120, %v51
    %v122 = vpop.permute.xlu0 %121
    %125 = vset.pattern.permute.xlu0 0
    %126 = vperm.xlu0 %125, %v52
    %v127 = vpop.permute.xlu0 %126
    %130 = vset.pattern.permute.xlu0 0
    %131 = vperm.xlu0 %130, %v53
    %v132 = vpop.permute.xlu0 %131
    %vm134 = vcmask 31744
    %v136 = vsel %vm134, %v22, 0
    %v139 = vsel %vm134, %v23, 0
    %v142 = vsel %vm134, %v24, 0
    %v145 = vsel %vm134, %v25, 0
    %v148 = vsel %vm134, %v26, 0
    %v151 = vsel %vm134, %v27, 0
    %v154 = vsel %vm134, %v28, 0
    %v157 = vsel %vm134, %v29, 0
    %v160 = vsel %vm134, %v30, 0
    %v163 = vsel %vm134, %v31, 0
    %v166 = vsel %vm134, %v32, 0
    %v169 = vsel %vm134, %v33, 0
    %v172 = vsel %vm134, %v34, 0
    %v175 = vsel %vm134, %v35, 0
    %v178 = vsel %vm134, %v36, 0
    %v181 = vsel %vm134, %v37, 0
    %vm183 = vcmask 1043456
    %v185 = vsel %vm183, %v21, 0
    %187 = vmatprep.subr.mxu0 0.0
    %188 = vmatpush1.msra.mxu0 %v185
    %189 = vmatprep.subr.mxu0 0.0
    %190 = vmatpush1.msra.mxu0 0.0
    %191 = vmatprep.subr.mxu0 0.0
    %192 = vmatpush1.msra.mxu0 0.0
    %193 = vmatprep.subr.mxu0 0.0
    %194 = vmatpush1.msra.mxu0 0.0
    %195 = vmatprep.subr.mxu0 0.0
    %196 = vmatpush1.msra.mxu0 0.0
    %197 = vmatprep.subr.mxu0 0.0
    %198 = vmatpush1.msra.mxu0 0.0
    %199 = vmatprep.subr.mxu0 0.0
    %200 = vmatpush1.msra.mxu0 0.0
    %201 = vmatprep.subr.mxu0 0.0
    %202 = vmatpush1.msra.mxu0 0.0
    %203 = vmatprep.subr.mxu0 0.0
    %204 = vmatpush1.msra.mxu0 0.0
    %205 = vmatprep.subr.mxu0 0.0
    %206 = vmatpush1.msra.mxu0 0.0
    %207 = vmatprep.subr.mxu0 0.0
    %208 = vmatpush1.msra.mxu0 0.0
    %209 = vmatprep.subr.mxu0 0.0
    %210 = vmatpush1.msra.mxu0 0.0
    %211 = vmatprep.subr.mxu0 0.0
    %212 = vmatpush1.msra.mxu0 0.0
    %213 = vmatprep.subr.mxu0 0.0
    %214 = vmatpush1.msra.mxu0 0.0
    %215 = vmatprep.subr.mxu0 0.0
    %216 = vmatpush1.msra.mxu0 0.0
    %217 = vmatprep.subr.mxu0 0.0
    %218 = vmatpush1.msra.mxu0 0.0
    %219 = vmatprep.subr.mxu0 0.0
    %220 = vmatpush1.msra.mxu0 0.0
    %221 = vmatprep.subr.mxu0 0.0
    %222 = vmatpush1.msra.mxu0 0.0
    %223 = vmatprep.subr.mxu0 0.0
    %224 = vmatpush1.msra.mxu0 0.0
    %225 = vmatprep.subr.mxu0 0.0
    %226 = vmatpush1.msra.mxu0 0.0
    %227 = vmatprep.subr.mxu0 0.0
    %228 = vmatpush1.msra.mxu0 0.0
    %229 = vmatprep.subr.mxu0 0.0
    %230 = vmatpush1.msra.mxu0 0.0
    %231 = vmatprep.subr.mxu0 0.0
    %232 = vmatpush1.msra.mxu0 0.0
    %233 = vmatprep.subr.mxu0 0.0
    %234 = vmatpush1.msra.mxu0 0.0
    %235 = vmatprep.subr.mxu0 0.0
    %236 = vmatpush1.msra.mxu0 0.0
    %237 = vmatprep.subr.mxu0 0.0
    %238 = vmatpush1.msra.mxu0 0.0
    %239 = vmatprep.subr.mxu0 0.0
    %240 = vmatpush1.msra.mxu0 0.0
    %241 = vmatprep.subr.mxu0 0.0
    %242 = vmatpush1.msra.mxu0 0.0
    %243 = vmatprep.subr.mxu0 0.0
    %244 = vmatpush1.msra.mxu0 0.0
    %245 = vmatprep.subr.mxu0 0.0
    %246 = vmatpush1.msra.mxu0 0.0
    %247 = vmatprep.subr.mxu0 0.0
    %248 = vmatpush1.msra.mxu0 0.0
    %249 = vmatprep.subr.mxu0 0.0
    %250 = vmatpush1.msra.mxu0 0.0
    %251 = vmatprep.mubr.f32.mxu0 0.0
    %252 = vmatmul.mubr.f32.gmra.mrb[0].mxu0 %v136
    %v253 = vpop.f32.mrb[0].mxu0
    %v254 = vadd.f32 %v57, %v253
    %v255 = vpop.f32.mrb[0].mxu0
    %256 = vmatprep.mubr.f32.mxu0 0.0
    %257 = vmatmul.mubr.f32.gmra.mrb[0].mxu0 %v139
    %v258 = vpop.f32.mrb[0].mxu0
    %v259 = vadd.f32 %v62, %v258
    %v260 = vpop.f32.mrb[0].mxu0
    %261 = vmatprep.mubr.f32.mxu0 0.0
    %262 = vmatmul.mubr.f32.gmra.mrb[0].mxu0 %v142
    %v263 = vpop.f32.mrb[0].mxu0
    %v264 = vadd.f32 %v67, %v263
    %v265 = vpop.f32.mrb[0].mxu0
    %266 = vmatprep.mubr.f32.mxu0 0.0
    %267 = vmatmul.mubr.f32.gmra.mrb[0].mxu0 %v145
    %v268 = vpop.f32.mrb[0].mxu0
    %v269 = vadd.f32 %v72, %v268
    %v270 = vpop.f32.mrb[0].mxu0
    %271 = vmatprep.mubr.f32.mxu0 0.0
    %272 = vmatmul.mubr.f32.gmra.mrb[0].mxu0 %v148
    %v273 = vpop.f32.mrb[0].mxu0
    %v274 = vadd.f32 %v77, %v273
    %v275 = vpop.f32.mrb[0].mxu0
    %276 = vmatprep.mubr.f32.mxu0 0.0
    %277 = vmatmul.mubr.f32.gmra.mrb[0].mxu0 %v151
    %v278 = vpop.f32.mrb[0].mxu0
    %v279 = vadd.f32 %v82, %v278
    %v280 = vpop.f32.mrb[0].mxu0
    %281 = vmatprep.mubr.f32.mxu0 0.0
    %282 = vmatmul.mubr.f32.gmra.mrb[0].mxu0 %v154
    %v283 = vpop.f32.mrb[0].mxu0
    %v284 = vadd.f32 %v87, %v283
    %v285 = vpop.f32.mrb[0].mxu0
    %286 = vmatprep.mubr.f32.mxu0 0.0
    %287 = vmatmul.mubr.f32.gmra.mrb[0].mxu0 %v157
    %v288 = vpop.f32.mrb[0].mxu0
    %v289 = vadd.f32 %v92, %v288
    %v290 = vpop.f32.mrb[0].mxu0
    %291 = vmatprep.mubr.f32.mxu0 0.0
    %292 = vmatmul.mubr.f32.gmra.mrb[0].mxu0 %v160
    %v293 = vpop.f32.mrb[0].mxu0
    %v294 = vadd.f32 %v97, %v293
    %v295 = vpop.f32.mrb[0].mxu0
    %296 = vmatprep.mubr.f32.mxu0 0.0
    %297 = vmatmul.mubr.f32.gmra.mrb[0].mxu0 %v163
    %v298 = vpop.f32.mrb[0].mxu0
    %v299 = vadd.f32 %v102, %v298
    %v300 = vpop.f32.mrb[0].mxu0
    %301 = vmatprep.mubr.f32.mxu0 0.0
    %302 = vmatmul.mubr.f32.gmra.mrb[0].mxu0 %v166
    %v303 = vpop.f32.mrb[0].mxu0
    %v304 = vadd.f32 %v107, %v303
    %v305 = vpop.f32.mrb[0].mxu0
    %306 = vmatprep.mubr.f32.mxu0 0.0
    %307 = vmatmul.mubr.f32.gmra.mrb[0].mxu0 %v169
    %v308 = vpop.f32.mrb[0].mxu0
    %v309 = vadd.f32 %v112, %v308
    %v310 = vpop.f32.mrb[0].mxu0
    %311 = vmatprep.mubr.f32.mxu0 0.0
    %312 = vmatmul.mubr.f32.gmra.mrb[0].mxu0 %v172
    %v313 = vpop.f32.mrb[0].mxu0
    %v314 = vadd.f32 %v117, %v313
    %v315 = vpop.f32.mrb[0].mxu0
    %316 = vmatprep.mubr.f32.mxu0 0.0
    %317 = vmatmul.mubr.f32.gmra.mrb[0].mxu0 %v175
    %v318 = vpop.f32.mrb[0].mxu0
    %v319 = vadd.f32 %v122, %v318
    %v320 = vpop.f32.mrb[0].mxu0
    %321 = vmatprep.mubr.f32.mxu0 0.0
    %322 = vmatmul.mubr.f32.gmra.mrb[0].mxu0 %v178
    %v323 = vpop.f32.mrb[0].mxu0
    %v324 = vadd.f32 %v127, %v323
    %v325 = vpop.f32.mrb[0].mxu0
    %326 = vmatprep.mubr.f32.mxu0 0.0
    %327 = vmatmul.mubr.f32.gmra.mrb[0].mxu0 %v181
    %v328 = vpop.f32.mrb[0].mxu0
    %v329 = vadd.f32 %v132, %v328
    %v330 = vpop.f32.mrb[0].mxu0
    %331 = vdwg.mxu0
    %v332 = vmax.f32 %v254, 0.0
    %v333 = vmax.f32 %v259, 0.0
    %v334 = vmax.f32 %v264, 0.0
    %v335 = vmax.f32 %v269, 0.0
    %v336 = vmax.f32 %v274, 0.0
    %v337 = vmax.f32 %v279, 0.0
    %v338 = vmax.f32 %v284, 0.0
    %v339 = vmax.f32 %v289, 0.0
    %v340 = vmax.f32 %v294, 0.0
    %v341 = vmax.f32 %v299, 0.0
    %v342 = vmax.f32 %v304, 0.0
    %v343 = vmax.f32 %v309, 0.0
    %v344 = vmax.f32 %v314, 0.0
    %v345 = vmax.f32 %v319, 0.0
    %v346 = vmax.f32 %v324, 0.0
    %v347 = vmax.f32 %v329, 0.0
    %v348 = vld [vmem:[%s3] sm:$0xff]
    %v349 = vld [vmem:[%s4] sm:$0xff]
    %351 = vset.pattern.permute.xlu0 0
    %352 = vperm.xlu0 %351, %v349
    %v353 = vpop.permute.xlu0 %352
    %355 = vmatprep.subr.mxu0 0.0
    %356 = vmatpush1.msra.mxu0 %v332
    %357 = vmatprep.subr.mxu0 0.0
    %358 = vmatpush1.msra.mxu0 %v333
    %359 = vmatprep.subr.mxu0 0.0
    %360 = vmatpush1.msra.mxu0 %v334
    %361 = vmatprep.subr.mxu0 0.0
    %362 = vmatpush1.msra.mxu0 %v335
    %363 = vmatprep.subr.mxu0 0.0
    %364 = vmatpush1.msra.mxu0 %v336
    %365 = vmatprep.subr.mxu0 0.0
    %366 = vmatpush1.msra.mxu0 %v337
    %367 = vmatprep.subr.mxu0 0.0
    %368 = vmatpush1.msra.mxu0 %v338
    %369 = vmatprep.subr.mxu0 0.0
    %370 = vmatpush1.msra.mxu0 %v339
    %371 = vmatprep.subr.mxu0 0.0
    %372 = vmatpush1.msra.mxu0 %v340
    %373 = vmatprep.subr.mxu0 0.0
    %374 = vmatpush1.msra.mxu0 %v341
    %375 = vmatprep.subr.mxu0 0.0
    %376 = vmatpush1.msra.mxu0 %v342
    %377 = vmatprep.subr.mxu0 0.0
    %378 = vmatpush1.msra.mxu0 %v343
    %379 = vmatprep.subr.mxu0 0.0
    %380 = vmatpush1.msra.mxu0 %v344
    %381 = vmatprep.subr.mxu0 0.0
    %382 = vmatpush1.msra.mxu0 %v345
    %383 = vmatprep.subr.mxu0 0.0
    %384 = vmatpush1.msra.mxu0 %v346
    %385 = vmatprep.subr.mxu0 0.0
    %386 = vmatpush1.msra.mxu0 %v347
    %387 = vmatprep.subr.mxu0 0.0
    %388 = vmatpush1.msra.mxu0 0.0
    %389 = vmatprep.subr.mxu0 0.0
    %390 = vmatpush1.msra.mxu0 0.0
    %391 = vmatprep.subr.mxu0 0.0
    %392 = vmatpush1.msra.mxu0 0.0
    %393 = vmatprep.subr.mxu0 0.0
    %394 = vmatpush1.msra.mxu0 0.0
    %395 = vmatprep.subr.mxu0 0.0
    %396 = vmatpush1.msra.mxu0 0.0
    %397 = vmatprep.subr.mxu0 0.0
    %398 = vmatpush1.msra.mxu0 0.0
    %399 = vmatprep.subr.mxu0 0.0
    %400 = vmatpush1.msra.mxu0 0.0
    %401 = vmatprep.subr.mxu0 0.0
    %402 = vmatpush1.msra.mxu0 0.0
    %403 = vmatprep.subr.mxu0 0.0
    %404 = vmatpush1.msra.mxu0 0.0
    %405 = vmatprep.subr.mxu0 0.0
    %406 = vmatpush1.msra.mxu0 0.0
    %407 = vmatprep.subr.mxu0 0.0
    %408 = vmatpush1.msra.mxu0 0.0
    %409 = vmatprep.subr.mxu0 0.0
    %410 = vmatpush1.msra.mxu0 0.0
    %411 = vmatprep.subr.mxu0 0.0
    %412 = vmatpush1.msra.mxu0 0.0
    %413 = vmatprep.subr.mxu0 0.0
    %414 = vmatpush1.msra.mxu0 0.0
    %415 = vmatprep.subr.mxu0 0.0
    %416 = vmatpush1.msra.mxu0 0.0
    %417 = vmatprep.subr.mxu0 0.0
    %418 = vmatpush1.msra.mxu0 0.0
    %419 = vmatprep.mubr.f32.mxu0 0.0
    %420 = vmatmul.mubr.f32.gmra.mrb[0].mxu0 %v348
    %v421 = vpop.f32.mrb[0].mxu0
    %v422 = vadd.f32 %v353, %v421
    %v423 = vpop.f32.mrb[0].mxu0
    %424 = vdwg.mxu0
    %v425 = vlaneseq
    %v426 = vshrl.u32 %v425, 7
    %vm427 = vcmp.lt.s32.totalorder %v426, 2
    %v428 = vsel %vm427, 1, 0
    %vm429 = vcmp.eq.s32.totalorder %v428, 1
    %v430 = vsel %vm429, %v422, -inf
    %v431 = vrot.slane %v430, 4
    %v432 = vmax.f32 %v430, %v431
    %v433 = vrot.slane %v432, 2
    %v434 = vmax.f32 %v432, %v433
    %v435 = vrot.slane %v434, 1
    %v436 = vmax.f32 %v434, %v435
    %v437 = vsub.f32 %v430, %v436
    %v438 = vmul.f32 %v437, 1.442695
    %v439 = vpow.pop %v438
    %v440 = vrot.slane %v439, 4
    %v441 = vadd.f32 %v439, %v440
    %v442 = vrot.slane %v441, 2
    %v443 = vadd.f32 %v441, %v442
    %v444 = vrot.slane %v443, 1
    %v445 = vadd.f32 %v443, %v444
    %v446 = vrcp.pop %v445
    %v447 = vmul.f32 %v439, %v446
    %vm448 = vcmp.eq.s32.totalorder %v426, 2
    %v449 = vsel %vm448, 1, 0
    %vm450 = vcmp.eq.s32.totalorder %v449, 1
    %v451 = vsel %vm450, %v422, 0.0
    %v452 = vsel %vm429, %v447, %v451
    %453 = vst [vmem:[#allocation2] sm:$0xff] %v452
    // Predicated region
    $region22: #{tpu_custom_call.1} parent=1 // pred_check
      _
    $region23: #{tpu_custom_call.1} parent=1 // pred_check_branch
      %455 = sbr.rel (0) target = $region25
    $region24: #{tpu_custom_call.1} parent=1 // pred_region
      %s457 = ssub.s32 128, 128
      %458 = vsyncadd [#allocation3], %s457
      %s460 = sshll.u32 [#allocation2], 4
      %s461 = int_to_ptr.vmem [resolvable:$true] %s460
      %463 = dma.vmem_to_hbm [thread:$0]  %s461, 128, %s5, [#allocation3]
    $region25: #{tpu_custom_call.1} parent=1 // pred_fallthru
      _
    // Predicated region
    $region26: #{tpu_custom_call.1} parent=1 // pred_check
      _
    $region27: #{tpu_custom_call.1} parent=1 // pred_check_branch
      %465 = sbr.rel (0) target = $region29
    $region28: #{tpu_custom_call.1} parent=1 // pred_region
      %466 = dma.done [#allocation3], 128
    $region29: #{tpu_custom_call.1} parent=1 // pred_fallthru
      _
    %467 = vsyncpa [#allocation3], 1

</llo_original>
